<compile_context>
chip_gen: v5e
topology: v5e:2x2
jax: 0.10.0
libtpu: 0.0.40
codegen_flags: <defaults>
</compile_context>

<pallas_src>
import jax
import jax.numpy as jnp
from jax import lax
from jax.experimental import pallas as pl
from jax.experimental.pallas import tpu as pltpu

_VMEM_LIMIT_BYTES = 64 * 1024 * 1024   # v7x physical; v5e/v6e can go higher


# ---------------------------------------------------------------------------
# helpers
# ---------------------------------------------------------------------------
def _tap_phase(k, stride):
    """3x3 / padding=1 tap k in {0,1,2}: input index = stride*o + (k - 1).

    Returns (phase, offset) with stride*o + (k-1) == stride*(o+offset) + phase.
    For stride >= 2 the offset is always in {-1, 0}, i.e. only a leading
    1-element halo is needed (stride must divide H and W)."""
    d = k - 1
    return d % stride, d // stride


def _choose_lane_tile(L, cap=4096):
    """Largest lane tile <= cap that divides L (prefer multiples of 128)."""
    if L <= cap:
        return L
    for t in range(cap - cap % 128, 127, -128):
        if L % t == 0:
            return t
    for t in range(cap, 0, -1):
        if L % t == 0:
            return t
    return cap  # no divisor: caller pads


# ---------------------------------------------------------------------------
# Fused kernel: depthwise 3x3 (stride fused) + 1x1 conv + BN + ReLU
# ---------------------------------------------------------------------------
def _make_fused_dw_pw_kernel(stride, Ho, Wo, Cin, Cout, B_tile):
    s = stride

    def kernel(x_ref, wdw_ref, wpw_ref, shift_ref, o_ref):
        # x_ref    : (B_tile, s*s, Ho+1, Wo+1, Cin)  halo-padded phase split
        # wdw_ref  : (9, Cin)                        depthwise taps, row = ki*3+kj
        # wpw_ref  : (Cout, Cin)                     1x1 weight, BN scale folded
        # shift_ref: (Cout, 1)                       BN shift
        # o_ref    : (B_tile, Cout, Ho*Wo)           channel-major, spatial lanes
        wdw = wdw_ref[...].astype(jnp.float32)                 # hoisted, 1 load

        acc = jnp.zeros((B_tile, Ho, Wo, Cin), jnp.float32)
        for ki in range(3):                                    # static 9-tap unroll
            pi, oi = _tap_phase(ki, s)
            for kj in range(3):
                pj, oj = _tap_phase(kj, s)
                p = pi * s + pj
                # static unit-stride slice of the halo-padded phase; the zero
                # halo row/col supplies the out-of-image taps.
                tap = x_ref[:, p, 1 + oi:1 + oi + Ho, 1 + oj:1 + oj + Wo, :]
                acc = acc + tap.astype(jnp.float32) * wdw[ki * 3 + kj]

        wpw = wpw_ref[...].astype(jnp.float32)                 # (Cout, Cin)
        shift = shift_ref[...].astype(jnp.float32)             # (Cout, 1)
        for b in range(B_tile):                                # static unroll
            # NT contraction over the minor Cin dim -> (Cout, Ho*Wo) directly,
            # no in-kernel transpose, lane-dense store.
            y = lax.dot_general(
                wpw, acc[b].reshape(Ho * Wo, Cin),
                (((1,), (1,)), ((), ())),
                preferred_element_type=jnp.float32)
            o_ref[b] = jnp.maximum(y + shift, 0.0).astype(o_ref.dtype)

    return kernel


def _fused_strided_forward(x_nchw, w_dw, w_pw_scaled_T, shift, stride,
                           max_batch_tile=8):
    """ReLU(BN(1x1(dw3x3_stride(x)))), NCHW in/out, single pallas_call."""
    N, Cin, H, W = x_nchw.shape
    s = stride
    assert s >= 2, "fused path requires stride >= 2 (stride==1 is pointwise)"
    assert H % s == 0 and W % s == 0, "stride must divide H and W"
    Ho, Wo = H // s, W // s
    Cout = w_pw_scaled_T.shape[0]

    # batch tile that divides N: amortises per-step overhead, bigger MXU work.
    bt = 1
    for cand in range(min(N, max_batch_tile), 0, -1):
        if N % cand == 0:
            bt = cand
            break

    # Space-to-batch phase split with the zero halo FUSED into it (one wrapper
    # copy total):  xph[n, pi*s+pj, 1+ho, 1+wo, c] = x[n, c, s*ho+pi, s*wo+pj],
    # and xph[..., 0, :, :] = xph[..., :, 0, :] = 0.
    xp = jnp.pad(x_nchw, ((0, 0), (0, 0), (s, 0), (s, 0)))
    xph = xp.reshape(N, Cin, Ho + 1, s, Wo + 1, s)
    xph = jnp.transpose(xph, (0, 3, 5, 2, 4, 1)).reshape(
        N, s * s, Ho + 1, Wo + 1, Cin)

    w_dw9 = w_dw.reshape(9, Cin)

    out = pl.pallas_call(
        _make_fused_dw_pw_kernel(s, Ho, Wo, Cin, Cout, bt),
        out_shape=jax.ShapeDtypeStruct((N, Cout, Ho * Wo), x_nchw.dtype),
        grid=(N // bt,),
        in_specs=[
            pl.BlockSpec((bt, s * s, Ho + 1, Wo + 1, Cin),
                         lambda n: (n, 0, 0, 0, 0)),
            pl.BlockSpec((9, Cin), lambda n: (0, 0)),
            pl.BlockSpec((Cout, Cin), lambda n: (0, 0)),
            pl.BlockSpec((Cout, 1), lambda n: (0, 0)),
        ],
        out_specs=pl.BlockSpec((bt, Cout, Ho * Wo), lambda n: (n, 0, 0)),
        compiler_params=pltpu.CompilerParams(
            dimension_semantics=("parallel",),
            vmem_limit_bytes=_VMEM_LIMIT_BYTES),
    )(xph, w_dw9, w_pw_scaled_T, shift[:, None])
    return out.reshape(N, Cout, Ho, Wo)                        # free reshape


# ---------------------------------------------------------------------------
# stride == 1 path: 1x1 conv (matmul) + folded BN + ReLU, spatial on lanes
# ---------------------------------------------------------------------------
def _pw_bn_relu_kernel(x_ref, w_ref, shift_ref, o_ref):
    # x_ref: (1, Cin, TL)  w_ref: (Cout, Cin)  shift_ref: (Cout, 1)
    # o_ref: (1, Cout, TL)  -- spatial (lane) dim is large / lane-dense
    y = jnp.dot(w_ref[...].astype(jnp.float32),
                x_ref[0].astype(jnp.float32),
                preferred_element_type=jnp.float32)
    y = jnp.maximum(y + shift_ref[...].astype(jnp.float32), 0.0)
    o_ref[0] = y.astype(o_ref.dtype)


def _pointwise_forward(x_nchw, w_pw_scaled_T, shift):
    N, Cin, H, W = x_nchw.shape
    Cout = w_pw_scaled_T.shape[0]
    L = H * W
    x2 = x_nchw.reshape(N, Cin, L)                             # free reshape
    TL = _choose_lane_tile(L)                                  # divides L when possible
    Lp = ((L + TL - 1) // TL) * TL
    if Lp != L:                                                # rare fallback
        x2 = jnp.pad(x2, ((0, 0), (0, 0), (0, Lp - L)))
    out = pl.pallas_call(
        _pw_bn_relu_kernel,
        out_shape=jax.ShapeDtypeStruct((N, Cout, Lp), x_nchw.dtype),
        grid=(N, Lp // TL),
        in_specs=[
            pl.BlockSpec((1, Cin, TL), lambda n, l: (n, 0, l)),
            pl.BlockSpec((Cout, Cin), lambda n, l: (0, 0)),
            pl.BlockSpec((Cout, 1), lambda n, l: (0, 0)),
        ],
        out_specs=pl.BlockSpec((1, Cout, TL), lambda n, l: (n, 0, l)),
        compiler_params=pltpu.CompilerParams(
            dimension_semantics=("parallel", "parallel"),
            vmem_limit_bytes=_VMEM_LIMIT_BYTES),
    )(x2, w_pw_scaled_T, shift[:, None])
    if Lp != L:
        out = out[:, :, :L]
    return out.reshape(N, Cout, H, W)


# ---------------------------------------------------------------------------
# AACBlock forward (non-deploy path): relu(bn(conv1x1(stride_layer(x))))
# ---------------------------------------------------------------------------
def aac_block_forward(x_nchw, params, stride):
    # fold inference-mode BN into per-channel scale/shift; the scale is folded
    # into the (Cout, Cin) 1x1 weight, the shift stays as the kernel bias.
    scale = params["bn_gamma"] / jnp.sqrt(params["bn_var"] + params["bn_eps"])
    shift = params["bn_beta"] - params["bn_mean"] * scale
    w_pw_scaled_T = jnp.transpose(params["w_pw"]) * scale[:, None]  # (Cout, Cin)
    if stride == 1:
        return _pointwise_forward(x_nchw, w_pw_scaled_T, shift)
    return _fused_strided_forward(x_nchw, params["w_dw"], w_pw_scaled_T,
                                  shift, stride)


# ---------------------------------------------------------------------------
# Deterministic parameter init (shapes from AACBlock.__init__)
# ---------------------------------------------------------------------------
def init_params(key, in_channels, out_channels):
    k = jax.random.split(key, 6)
    # PyTorch shapes: depthwise (Cin,1,3,3), pointwise (Cout,Cin,1,1)
    w_dw_pt = 0.2 * jax.random.normal(k[0], (in_channels, 1, 3, 3), jnp.float32)
    w_pw_pt = 0.3 * jax.random.normal(k[1], (out_channels, in_channels, 1, 1),
                                      jnp.float32)
    gamma = jax.random.uniform(k[2], (out_channels,), jnp.float32, 0.5, 1.5)
    beta = 0.1 * jax.random.normal(k[3], (out_channels,), jnp.float32)
    mean = 0.1 * jax.random.normal(k[4], (out_channels,), jnp.float32)
    var = jax.random.uniform(k[5], (out_channels,), jnp.float32, 0.5, 1.5)
    return {
        "w_dw": jnp.transpose(w_dw_pt[:, 0], (1, 2, 0)),       # (3, 3, Cin)
        "w_pw": jnp.transpose(w_pw_pt[:, :, 0, 0], (1, 0)),    # (Cin, Cout)
        "bn_gamma": gamma,
        "bn_beta": beta,
        "bn_mean": mean,
        "bn_var": var,
        "bn_eps": 1e-5,
    }


# ---------------------------------------------------------------------------
# Pure-JAX reference (sanity check of the Pallas path)
# ---------------------------------------------------------------------------
def reference_forward(x_nchw, params, stride, in_channels):
    x = jnp.transpose(x_nchw, (0, 2, 3, 1))
    if stride != 1:
        w_hwio = params["w_dw"][:, :, None, :]                 # (3, 3, 1, Cin)
        x = lax.conv_general_dilated(
            x, w_hwio, window_strides=(stride, stride),
            padding=((1, 1), (1, 1)),
            dimension_numbers=("NHWC", "HWIO", "NHWC"),
            feature_group_count=in_channels,
            precision=lax.Precision.HIGHEST)
    y = jnp.einsum("nhwc,co->nhwo", x, params["w_pw"],
                   precision=lax.Precision.HIGHEST)
    scale = params["bn_gamma"] / jnp.sqrt(params["bn_var"] + params["bn_eps"])
    shift = params["bn_beta"] - params["bn_mean"] * scale
    y = jnp.maximum(y * scale + shift, 0.0)
    return jnp.transpose(y, (0, 3, 1, 2))


if __name__ == "__main__":
    key = jax.random.PRNGKey(0)
    kx, kp = jax.random.split(key)

    in_channels, out_channels = 4, 8
    x = jax.random.normal(kx, (2, in_channels, 16, 16), jnp.float32)
    params = init_params(kp, in_channels, out_channels)

    # strided AAC block: depthwise 3x3 stride-2 -> 1x1 -> BN -> ReLU (fused)
    out_s2 = jax.block_until_ready(aac_block_forward(x, params, stride=2))
    assert out_s2.shape == (2, out_channels, 8, 8), out_s2.shape
    ref_s2 = reference_forward(x, params, 2, in_channels)
    if not jnp.allclose(out_s2, ref_s2, rtol=1e-3, atol=1e-3):
        raise AssertionError("stride=2 Pallas output mismatches JAX reference")

    # stride-1 AAC block: Identity -> 1x1 -> BN -> ReLU
    out_s1 = jax.block_until_ready(aac_block_forward(x, params, stride=1))
    assert out_s1.shape == (2, out_channels, 16, 16), out_s1.shape
    ref_s1 = reference_forward(x, params, 1, in_channels)
    if not jnp.allclose(out_s1, ref_s1, rtol=1e-3, atol=1e-3):
        raise AssertionError("stride=1 Pallas output mismatches JAX reference")

    print("KERNEL_OK")
</pallas_src>

<mosaic_0001>
module attributes {stable_mosaic.version = 11 : i64} {
  func.func @kernel(%arg0: i32, %arg1: memref<2x4x9x9x4xf32, #tpu.memory_space<vmem>>, %arg2: memref<9x4xf32, #tpu.memory_space<vmem>>, %arg3: memref<8x4xf32, #tpu.memory_space<vmem>>, %arg4: memref<8x1xf32, #tpu.memory_space<vmem>>, %arg5: memref<2x8x64xf32, #tpu.memory_space<vmem>>) attributes {dimension_semantics = [#tpu.dimension_semantics<parallel>], iteration_bounds = array<i64: 1>, scalar_prefetch = 0 : i64, scratch_operands = 0 : i64, tpu.core_type = #tpu.core_type<tc>, window_params = [{transform_indices = @transform_0, window_bounds = array<i64: 2, 4, 9, 9, 4>}, {pipeline_mode = #tpu.pipeline_mode<synchronous>, transform_indices = @transform_1, window_bounds = array<i64: 9, 4>}, {pipeline_mode = #tpu.pipeline_mode<synchronous>, transform_indices = @transform_2, window_bounds = array<i64: 8, 4>}, {pipeline_mode = #tpu.pipeline_mode<synchronous>, transform_indices = @transform_3, window_bounds = array<i64: 8, 1>}, {transform_indices = @transform_4, window_bounds = array<i64: 2, 8, 64>}]} {
    %c0 = arith.constant 0 : index
    %c0_0 = arith.constant 0 : index
    %0 = vector.load %arg2[%c0, %c0_0] : memref<9x4xf32, #tpu.memory_space<vmem>>, vector<9x4xf32>
    %cst = arith.constant 0.000000e+00 : f32
    %1 = vector.broadcast %cst : f32 to vector<2x8x8x4xf32>
    %c0_1 = arith.constant 0 : index
    %c3 = arith.constant 3 : index
    %c0_2 = arith.constant 0 : index
    %c0_3 = arith.constant 0 : index
    %c0_4 = arith.constant 0 : index
    %2 = vector.load %arg1[%c0_1, %c3, %c0_2, %c0_3, %c0_4] : memref<2x4x9x9x4xf32, #tpu.memory_space<vmem>>, vector<2x1x8x8x4xf32>
    %3 = vector.shape_cast %2 : vector<2x1x8x8x4xf32> to vector<2x8x8x4xf32>
    %4 = vector.extract_strided_slice %0 {offsets = [0, 0], sizes = [1, 4], strides = [1, 1]} : vector<9x4xf32> to vector<1x4xf32>
    %5 = vector.shape_cast %4 : vector<1x4xf32> to vector<4xf32>
    %6 = vector.shape_cast %5 : vector<4xf32> to vector<1x1x1x4xf32>
    %7 = vector.broadcast %6 : vector<1x1x1x4xf32> to vector<2x8x8x4xf32>
    %8 = arith.mulf %3, %7 : vector<2x8x8x4xf32>
    %9 = arith.addf %1, %8 : vector<2x8x8x4xf32>
    %c0_5 = arith.constant 0 : index
    %c2 = arith.constant 2 : index
    %c0_6 = arith.constant 0 : index
    %c1 = arith.constant 1 : index
    %c0_7 = arith.constant 0 : index
    %10 = vector.load %arg1[%c0_5, %c2, %c0_6, %c1, %c0_7] : memref<2x4x9x9x4xf32, #tpu.memory_space<vmem>>, vector<2x1x8x8x4xf32>
    %11 = vector.shape_cast %10 : vector<2x1x8x8x4xf32> to vector<2x8x8x4xf32>
    %12 = vector.extract_strided_slice %0 {offsets = [1, 0], sizes = [1, 4], strides = [1, 1]} : vector<9x4xf32> to vector<1x4xf32>
    %13 = vector.shape_cast %12 : vector<1x4xf32> to vector<4xf32>
    %14 = vector.shape_cast %13 : vector<4xf32> to vector<1x1x1x4xf32>
    %15 = vector.broadcast %14 : vector<1x1x1x4xf32> to vector<2x8x8x4xf32>
    %16 = arith.mulf %11, %15 : vector<2x8x8x4xf32>
    %17 = arith.addf %9, %16 : vector<2x8x8x4xf32>
    %c0_8 = arith.constant 0 : index
    %c3_9 = arith.constant 3 : index
    %c0_10 = arith.constant 0 : index
    %c1_11 = arith.constant 1 : index
    %c0_12 = arith.constant 0 : index
    %18 = vector.load %arg1[%c0_8, %c3_9, %c0_10, %c1_11, %c0_12] : memref<2x4x9x9x4xf32, #tpu.memory_space<vmem>>, vector<2x1x8x8x4xf32>
    %19 = vector.shape_cast %18 : vector<2x1x8x8x4xf32> to vector<2x8x8x4xf32>
    %20 = vector.extract_strided_slice %0 {offsets = [2, 0], sizes = [1, 4], strides = [1, 1]} : vector<9x4xf32> to vector<1x4xf32>
    %21 = vector.shape_cast %20 : vector<1x4xf32> to vector<4xf32>
    %22 = vector.shape_cast %21 : vector<4xf32> to vector<1x1x1x4xf32>
    %23 = vector.broadcast %22 : vector<1x1x1x4xf32> to vector<2x8x8x4xf32>
    %24 = arith.mulf %19, %23 : vector<2x8x8x4xf32>
    %25 = arith.addf %17, %24 : vector<2x8x8x4xf32>
    %c0_13 = arith.constant 0 : index
    %c1_14 = arith.constant 1 : index
    %c1_15 = arith.constant 1 : index
    %c0_16 = arith.constant 0 : index
    %c0_17 = arith.constant 0 : index
    %26 = vector.load %arg1[%c0_13, %c1_14, %c1_15, %c0_16, %c0_17] : memref<2x4x9x9x4xf32, #tpu.memory_space<vmem>>, vector<2x1x8x8x4xf32>
    %27 = vector.shape_cast %26 : vector<2x1x8x8x4xf32> to vector<2x8x8x4xf32>
    %28 = vector.extract_strided_slice %0 {offsets = [3, 0], sizes = [1, 4], strides = [1, 1]} : vector<9x4xf32> to vector<1x4xf32>
    %29 = vector.shape_cast %28 : vector<1x4xf32> to vector<4xf32>
    %30 = vector.shape_cast %29 : vector<4xf32> to vector<1x1x1x4xf32>
    %31 = vector.broadcast %30 : vector<1x1x1x4xf32> to vector<2x8x8x4xf32>
    %32 = arith.mulf %27, %31 : vector<2x8x8x4xf32>
    %33 = arith.addf %25, %32 : vector<2x8x8x4xf32>
    %c0_18 = arith.constant 0 : index
    %c0_19 = arith.constant 0 : index
    %c1_20 = arith.constant 1 : index
    %c1_21 = arith.constant 1 : index
    %c0_22 = arith.constant 0 : index
    %34 = vector.load %arg1[%c0_18, %c0_19, %c1_20, %c1_21, %c0_22] : memref<2x4x9x9x4xf32, #tpu.memory_space<vmem>>, vector<2x1x8x8x4xf32>
    %35 = vector.shape_cast %34 : vector<2x1x8x8x4xf32> to vector<2x8x8x4xf32>
    %36 = vector.extract_strided_slice %0 {offsets = [4, 0], sizes = [1, 4], strides = [1, 1]} : vector<9x4xf32> to vector<1x4xf32>
    %37 = vector.shape_cast %36 : vector<1x4xf32> to vector<4xf32>
    %38 = vector.shape_cast %37 : vector<4xf32> to vector<1x1x1x4xf32>
    %39 = vector.broadcast %38 : vector<1x1x1x4xf32> to vector<2x8x8x4xf32>
    %40 = arith.mulf %35, %39 : vector<2x8x8x4xf32>
    %41 = arith.addf %33, %40 : vector<2x8x8x4xf32>
    %c0_23 = arith.constant 0 : index
    %c1_24 = arith.constant 1 : index
    %c1_25 = arith.constant 1 : index
    %c1_26 = arith.constant 1 : index
    %c0_27 = arith.constant 0 : index
    %42 = vector.load %arg1[%c0_23, %c1_24, %c1_25, %c1_26, %c0_27] : memref<2x4x9x9x4xf32, #tpu.memory_space<vmem>>, vector<2x1x8x8x4xf32>
    %43 = vector.shape_cast %42 : vector<2x1x8x8x4xf32> to vector<2x8x8x4xf32>
    %44 = vector.extract_strided_slice %0 {offsets = [5, 0], sizes = [1, 4], strides = [1, 1]} : vector<9x4xf32> to vector<1x4xf32>
    %45 = vector.shape_cast %44 : vector<1x4xf32> to vector<4xf32>
    %46 = vector.shape_cast %45 : vector<4xf32> to vector<1x1x1x4xf32>
    %47 = vector.broadcast %46 : vector<1x1x1x4xf32> to vector<2x8x8x4xf32>
    %48 = arith.mulf %43, %47 : vector<2x8x8x4xf32>
    %49 = arith.addf %41, %48 : vector<2x8x8x4xf32>
    %c0_28 = arith.constant 0 : index
    %c3_29 = arith.constant 3 : index
    %c1_30 = arith.constant 1 : index
    %c0_31 = arith.constant 0 : index
    %c0_32 = arith.constant 0 : index
    %50 = vector.load %arg1[%c0_28, %c3_29, %c1_30, %c0_31, %c0_32] : memref<2x4x9x9x4xf32, #tpu.memory_space<vmem>>, vector<2x1x8x8x4xf32>
    %51 = vector.shape_cast %50 : vector<2x1x8x8x4xf32> to vector<2x8x8x4xf32>
    %52 = vector.extract_strided_slice %0 {offsets = [6, 0], sizes = [1, 4], strides = [1, 1]} : vector<9x4xf32> to vector<1x4xf32>
    %53 = vector.shape_cast %52 : vector<1x4xf32> to vector<4xf32>
    %54 = vector.shape_cast %53 : vector<4xf32> to vector<1x1x1x4xf32>
    %55 = vector.broadcast %54 : vector<1x1x1x4xf32> to vector<2x8x8x4xf32>
    %56 = arith.mulf %51, %55 : vector<2x8x8x4xf32>
    %57 = arith.addf %49, %56 : vector<2x8x8x4xf32>
    %c0_33 = arith.constant 0 : index
    %c2_34 = arith.constant 2 : index
    %c1_35 = arith.constant 1 : index
    %c1_36 = arith.constant 1 : index
    %c0_37 = arith.constant 0 : index
    %58 = vector.load %arg1[%c0_33, %c2_34, %c1_35, %c1_36, %c0_37] : memref<2x4x9x9x4xf32, #tpu.memory_space<vmem>>, vector<2x1x8x8x4xf32>
    %59 = vector.shape_cast %58 : vector<2x1x8x8x4xf32> to vector<2x8x8x4xf32>
    %60 = vector.extract_strided_slice %0 {offsets = [7, 0], sizes = [1, 4], strides = [1, 1]} : vector<9x4xf32> to vector<1x4xf32>
    %61 = vector.shape_cast %60 : vector<1x4xf32> to vector<4xf32>
    %62 = vector.shape_cast %61 : vector<4xf32> to vector<1x1x1x4xf32>
    %63 = vector.broadcast %62 : vector<1x1x1x4xf32> to vector<2x8x8x4xf32>
    %64 = arith.mulf %59, %63 : vector<2x8x8x4xf32>
    %65 = arith.addf %57, %64 : vector<2x8x8x4xf32>
    %c0_38 = arith.constant 0 : index
    %c3_39 = arith.constant 3 : index
    %c1_40 = arith.constant 1 : index
    %c1_41 = arith.constant 1 : index
    %c0_42 = arith.constant 0 : index
    %66 = vector.load %arg1[%c0_38, %c3_39, %c1_40, %c1_41, %c0_42] : memref<2x4x9x9x4xf32, #tpu.memory_space<vmem>>, vector<2x1x8x8x4xf32>
    %67 = vector.shape_cast %66 : vector<2x1x8x8x4xf32> to vector<2x8x8x4xf32>
    %68 = vector.extract_strided_slice %0 {offsets = [8, 0], sizes = [1, 4], strides = [1, 1]} : vector<9x4xf32> to vector<1x4xf32>
    %69 = vector.shape_cast %68 : vector<1x4xf32> to vector<4xf32>
    %70 = vector.shape_cast %69 : vector<4xf32> to vector<1x1x1x4xf32>
    %71 = vector.broadcast %70 : vector<1x1x1x4xf32> to vector<2x8x8x4xf32>
    %72 = arith.mulf %67, %71 : vector<2x8x8x4xf32>
    %73 = arith.addf %65, %72 : vector<2x8x8x4xf32>
    %c0_43 = arith.constant 0 : index
    %c0_44 = arith.constant 0 : index
    %74 = vector.load %arg3[%c0_43, %c0_44] : memref<8x4xf32, #tpu.memory_space<vmem>>, vector<8x4xf32>
    %c0_45 = arith.constant 0 : index
    %c0_46 = arith.constant 0 : index
    %75 = vector.load %arg4[%c0_45, %c0_46] : memref<8x1xf32, #tpu.memory_space<vmem>>, vector<8x1xf32>
    %76 = vector.extract_strided_slice %73 {offsets = [0, 0, 0, 0], sizes = [1, 8, 8, 4], strides = [1, 1, 1, 1]} : vector<2x8x8x4xf32> to vector<1x8x8x4xf32>
    %77 = vector.shape_cast %76 : vector<1x8x8x4xf32> to vector<8x8x4xf32>
    %78 = vector.shape_cast %77 : vector<8x8x4xf32> to vector<64x4xf32>
    %cst_47 = arith.constant dense<0.000000e+00> : vector<8x64xf32>
    %79 = tpu.matmul %74, %78, %cst_47 {dimension_numbers = #tpu.dot_dimension_numbers<[1], [1], [0], [0], [0, 0, 1, 0], [], []>} : vector<8x4xf32>, vector<64x4xf32>, vector<8x64xf32> -> vector<8x64xf32>
    %80 = vector.broadcast %75 : vector<8x1xf32> to vector<8x64xf32>
    %81 = arith.addf %79, %80 : vector<8x64xf32>
    %cst_48 = arith.constant 0.000000e+00 : f32
    %82 = vector.broadcast %cst_48 : f32 to vector<8x64xf32>
    %83 = arith.maximumf %81, %82 : vector<8x64xf32>
    %c0_49 = arith.constant 0 : index
    %c0_50 = arith.constant 0 : index
    %c0_51 = arith.constant 0 : index
    %84 = vector.load %arg5[%c0_49, %c0_50, %c0_51] : memref<2x8x64xf32, #tpu.memory_space<vmem>>, vector<1x8x64xf32>
    %85 = vector.shape_cast %84 : vector<1x8x64xf32> to vector<8x64xf32>
    %86 = vector.shape_cast %83 : vector<8x64xf32> to vector<1x8x64xf32>
    tpu.vector_store %arg5[%c0_49, %c0_50, %c0_51], %86 {strides = array<i32>} : memref<2x8x64xf32, #tpu.memory_space<vmem>>, vector<1x8x64xf32>,
    %87 = vector.extract_strided_slice %73 {offsets = [1, 0, 0, 0], sizes = [1, 8, 8, 4], strides = [1, 1, 1, 1]} : vector<2x8x8x4xf32> to vector<1x8x8x4xf32>
    %88 = vector.shape_cast %87 : vector<1x8x8x4xf32> to vector<8x8x4xf32>
    %89 = vector.shape_cast %88 : vector<8x8x4xf32> to vector<64x4xf32>
    %cst_52 = arith.constant dense<0.000000e+00> : vector<8x64xf32>
    %90 = tpu.matmul %74, %89, %cst_52 {dimension_numbers = #tpu.dot_dimension_numbers<[1], [1], [0], [0], [0, 0, 1, 0], [], []>} : vector<8x4xf32>, vector<64x4xf32>, vector<8x64xf32> -> vector<8x64xf32>
    %91 = vector.broadcast %75 : vector<8x1xf32> to vector<8x64xf32>
    %92 = arith.addf %90, %91 : vector<8x64xf32>
    %cst_53 = arith.constant 0.000000e+00 : f32
    %93 = vector.broadcast %cst_53 : f32 to vector<8x64xf32>
    %94 = arith.maximumf %92, %93 : vector<8x64xf32>
    %c1_54 = arith.constant 1 : index
    %c0_55 = arith.constant 0 : index
    %c0_56 = arith.constant 0 : index
    %95 = vector.load %arg5[%c1_54, %c0_55, %c0_56] : memref<2x8x64xf32, #tpu.memory_space<vmem>>, vector<1x8x64xf32>
    %96 = vector.shape_cast %95 : vector<1x8x64xf32> to vector<8x64xf32>
    %97 = vector.shape_cast %94 : vector<8x64xf32> to vector<1x8x64xf32>
    tpu.vector_store %arg5[%c1_54, %c0_55, %c0_56], %97 {strides = array<i32>} : memref<2x8x64xf32, #tpu.memory_space<vmem>>, vector<1x8x64xf32>,
    return
  }
  func.func @transform_0(%arg0: i32) -> (i32, i32, i32, i32, i32) {
    %c0_i32 = arith.constant 0 : i32
    %c0_i32_0 = arith.constant 0 : i32
    %c0_i32_1 = arith.constant 0 : i32
    %c0_i32_2 = arith.constant 0 : i32
    %c0_i32_3 = arith.constant 0 : i32
    return %arg0, %c0_i32, %c0_i32_0, %c0_i32_1, %c0_i32_2 : i32, i32, i32, i32, i32
  }
  func.func @transform_1(%arg0: i32) -> (i32, i32) {
    %c0_i32 = arith.constant 0 : i32
    %c0_i32_0 = arith.constant 0 : i32
    %c0_i32_1 = arith.constant 0 : i32
    return %c0_i32, %c0_i32_0 : i32, i32
  }
  func.func @transform_2(%arg0: i32) -> (i32, i32) {
    %c0_i32 = arith.constant 0 : i32
    %c0_i32_0 = arith.constant 0 : i32
    %c0_i32_1 = arith.constant 0 : i32
    return %c0_i32, %c0_i32_0 : i32, i32
  }
  func.func @transform_3(%arg0: i32) -> (i32, i32) {
    %c0_i32 = arith.constant 0 : i32
    %c0_i32_0 = arith.constant 0 : i32
    %c0_i32_1 = arith.constant 0 : i32
    return %c0_i32, %c0_i32_0 : i32, i32
  }
  func.func @transform_4(%arg0: i32) -> (i32, i32, i32) {
    %c0_i32 = arith.constant 0 : i32
    %c0_i32_0 = arith.constant 0 : i32
    %c0_i32_1 = arith.constant 0 : i32
    return %arg0, %c0_i32, %c0_i32_0 : i32, i32, i32
  }
}

</mosaic_0001>

<llo_original>
// kernel: tpu_custom_call.1
$region0: #{tpu_custom_call.1}
  #allocation0 [shape = 'u32[]', space=smem, size = 0x4, offset = 0x4, fixed_abs, tag = 'smem constant byte address 0x4 - core index']
  #allocation1 [shape = 'u32[72,128]{1,0:T(1,128)}', space=vmem, size = 0x9000, scoped, tag = 'internal scratch']
  %s0 = inlined_call_operand.vmem [shape: f32[2,4,9,9,4], index: 0, kind: input, shape index: {}]
  %s1 = inlined_call_operand.vmem [shape: f32[9,4], index: 1, kind: input, shape index: {}]
  %s2 = inlined_call_operand.vmem [shape: f32[8,4], index: 2, kind: input, shape index: {}]
  %s3 = inlined_call_operand.vmem [shape: f32[8,1], index: 3, kind: input, shape index: {}]
  %s4 = inlined_call_operand.hbm [shape: f32[2,8,64], index: 4, kind: output, shape index: {}]
  %s5 = sld [smem:[#allocation0]]
  $region26: #{tpu_custom_call.1} parent=0
    _
  %s7 = ssub.s32 1, %s5
  %s8 = scalar_select 0, %s7, %s5
  $region1: #{tpu_custom_call.1} parent=0
    #allocation2 [shape = 'u8[8192]{0}', space=vmem, size = 0x2000, scoped, tag = 'output window, operand 0, single buffered']
    #allocation3 [shape = 's32[1]{0}', space=sflag, size = 0x4, scoped, tag = 'scoped memory for tpu_custom_call.1']
    %9 = vsyncpa [#allocation3], 0
    // Predicated region
    $region2: #{tpu_custom_call.1} parent=1 // pred_check
      _
    $region3: #{tpu_custom_call.1} parent=1 // pred_check_branch
      %11 = sbr.rel (0) target = $region5
    $region4: #{tpu_custom_call.1} parent=1 // pred_region
      _
    $region5: #{tpu_custom_call.1} parent=1 // pred_fallthru
      _
    // Predicated region
    $region6: #{tpu_custom_call.1} parent=1 // pred_check
      _
    $region7: #{tpu_custom_call.1} parent=1 // pred_check_branch
      %13 = sbr.rel (0) target = $region9
    $region8: #{tpu_custom_call.1} parent=1 // pred_region
      _
    $region9: #{tpu_custom_call.1} parent=1 // pred_fallthru
      _
    // Predicated region
    $region10: #{tpu_custom_call.1} parent=1 // pred_check
      _
    $region11: #{tpu_custom_call.1} parent=1 // pred_check_branch
      %15 = sbr.rel (0) target = $region13
    $region12: #{tpu_custom_call.1} parent=1 // pred_region
      _
    $region13: #{tpu_custom_call.1} parent=1 // pred_fallthru
      _
    // Predicated region
    $region14: #{tpu_custom_call.1} parent=1 // pred_check
      _
    $region15: #{tpu_custom_call.1} parent=1 // pred_check_branch
      %17 = sbr.rel (0) target = $region17
    $region16: #{tpu_custom_call.1} parent=1 // pred_region
      _
    $region17: #{tpu_custom_call.1} parent=1 // pred_fallthru
      _
    %v18 = vld [vmem:[%s1] sm:$0xff]
    %v19 = vld [vmem:[%s1 + $0x8] sm:$0x1]
    %s20 = scalar_lea.vmem %s0, 432
    %v21 = vld [vmem:[%s20] sm:$0xff]
    %v22 = vld [vmem:[%s20 + $0x10] sm:$0xff]
    %v23 = vld [vmem:[%s20 + $0x20] sm:$0xff]
    %v24 = vld [vmem:[%s20 + $0x30] sm:$0xff]
    %v25 = vld [vmem:[%s20 + $0x40] sm:$0xff]
    %v26 = vld [vmem:[%s20 + $0x50] sm:$0xff]
    %v27 = vld [vmem:[%s20 + $0x60] sm:$0xff]
    %v28 = vld [vmem:[%s20 + $0x70] sm:$0xff]
    %v29 = vld [vmem:[%s20 + $0x240] sm:$0xff]
    %v30 = vld [vmem:[%s20 + $0x250] sm:$0xff]
    %v31 = vld [vmem:[%s20 + $0x260] sm:$0xff]
    %v32 = vld [vmem:[%s20 + $0x270] sm:$0xff]
    %v33 = vld [vmem:[%s20 + $0x280] sm:$0xff]
    %v34 = vld [vmem:[%s20 + $0x290] sm:$0xff]
    %v35 = vld [vmem:[%s20 + $0x2a0] sm:$0xff]
    %v36 = vld [vmem:[%s20 + $0x2b0] sm:$0xff]
    %v37 = vperm.slane %v18, 0
    %v38 = vmul.f32 %v21, %v37
    %v39 = vmul.f32 %v22, %v37
    %v40 = vmul.f32 %v23, %v37
    %v41 = vmul.f32 %v24, %v37
    %v42 = vmul.f32 %v25, %v37
    %v43 = vmul.f32 %v26, %v37
    %v44 = vmul.f32 %v27, %v37
    %v45 = vmul.f32 %v28, %v37
    %v46 = vmul.f32 %v29, %v37
    %v47 = vmul.f32 %v30, %v37
    %v48 = vmul.f32 %v31, %v37
    %v49 = vmul.f32 %v32, %v37
    %v50 = vmul.f32 %v33, %v37
    %v51 = vmul.f32 %v34, %v37
    %v52 = vmul.f32 %v35, %v37
    %v53 = vmul.f32 %v36, %v37
    %v54 = vadd.f32 %v38, 0.0
    %v55 = vadd.f32 %v39, 0.0
    %v56 = vadd.f32 %v40, 0.0
    %v57 = vadd.f32 %v41, 0.0
    %v58 = vadd.f32 %v42, 0.0
    %v59 = vadd.f32 %v43, 0.0
    %v60 = vadd.f32 %v44, 0.0
    %v61 = vadd.f32 %v45, 0.0
    %v62 = vadd.f32 %v46, 0.0
    %v63 = vadd.f32 %v47, 0.0
    %v64 = vadd.f32 %v48, 0.0
    %v65 = vadd.f32 %v49, 0.0
    %v66 = vadd.f32 %v50, 0.0
    %v67 = vadd.f32 %v51, 0.0
    %v68 = vadd.f32 %v52, 0.0
    %v69 = vadd.f32 %v53, 0.0
    %s70 = scalar_lea.vmem %s0, 288
    %v71 = vld [vmem:[%s70 + $0x1] sm:$0xff]
    %v72 = vld [vmem:[%s70 + $0x11] sm:$0xff]
    %v73 = vld [vmem:[%s70 + $0x21] sm:$0xff]
    %v74 = vld [vmem:[%s70 + $0x31] sm:$0xff]
    %v75 = vld [vmem:[%s70 + $0x41] sm:$0xff]
    %v76 = vld [vmem:[%s70 + $0x51] sm:$0xff]
    %v77 = vld [vmem:[%s70 + $0x61] sm:$0xff]
    %v78 = vld [vmem:[%s70 + $0x71] sm:$0xff]
    %v79 = vld [vmem:[%s70 + $0x241] sm:$0xff]
    %v80 = vld [vmem:[%s70 + $0x251] sm:$0xff]
    %v81 = vld [vmem:[%s70 + $0x261] sm:$0xff]
    %v82 = vld [vmem:[%s70 + $0x271] sm:$0xff]
    %v83 = vld [vmem:[%s70 + $0x281] sm:$0xff]
    %v84 = vld [vmem:[%s70 + $0x291] sm:$0xff]
    %v85 = vld [vmem:[%s70 + $0x2a1] sm:$0xff]
    %v86 = vld [vmem:[%s70 + $0x2b1] sm:$0xff]
    %v87 = vperm.slane %v18, 1
    %v88 = vmul.f32 %v71, %v87
    %v89 = vmul.f32 %v72, %v87
    %v90 = vmul.f32 %v73, %v87
    %v91 = vmul.f32 %v74, %v87
    %v92 = vmul.f32 %v75, %v87
    %v93 = vmul.f32 %v76, %v87
    %v94 = vmul.f32 %v77, %v87
    %v95 = vmul.f32 %v78, %v87
    %v96 = vmul.f32 %v79, %v87
    %v97 = vmul.f32 %v80, %v87
    %v98 = vmul.f32 %v81, %v87
    %v99 = vmul.f32 %v82, %v87
    %v100 = vmul.f32 %v83, %v87
    %v101 = vmul.f32 %v84, %v87
    %v102 = vmul.f32 %v85, %v87
    %v103 = vmul.f32 %v86, %v87
    %v104 = vadd.f32 %v54, %v88
    %v105 = vadd.f32 %v55, %v89
    %v106 = vadd.f32 %v56, %v90
    %v107 = vadd.f32 %v57, %v91
    %v108 = vadd.f32 %v58, %v92
    %v109 = vadd.f32 %v59, %v93
    %v110 = vadd.f32 %v60, %v94
    %v111 = vadd.f32 %v61, %v95
    %v112 = vadd.f32 %v62, %v96
    %v113 = vadd.f32 %v63, %v97
    %v114 = vadd.f32 %v64, %v98
    %v115 = vadd.f32 %v65, %v99
    %v116 = vadd.f32 %v66, %v100
    %v117 = vadd.f32 %v67, %v101
    %v118 = vadd.f32 %v68, %v102
    %v119 = vadd.f32 %v69, %v103
    %v120 = vld [vmem:[%s20 + $0x1] sm:$0xff]
    %v121 = vld [vmem:[%s20 + $0x11] sm:$0xff]
    %v122 = vld [vmem:[%s20 + $0x21] sm:$0xff]
    %v123 = vld [vmem:[%s20 + $0x31] sm:$0xff]
    %v124 = vld [vmem:[%s20 + $0x41] sm:$0xff]
    %v125 = vld [vmem:[%s20 + $0x51] sm:$0xff]
    %v126 = vld [vmem:[%s20 + $0x61] sm:$0xff]
    %v127 = vld [vmem:[%s20 + $0x71] sm:$0xff]
    %v128 = vld [vmem:[%s20 + $0x241] sm:$0xff]
    %v129 = vld [vmem:[%s20 + $0x251] sm:$0xff]
    %v130 = vld [vmem:[%s20 + $0x261] sm:$0xff]
    %v131 = vld [vmem:[%s20 + $0x271] sm:$0xff]
    %v132 = vld [vmem:[%s20 + $0x281] sm:$0xff]
    %v133 = vld [vmem:[%s20 + $0x291] sm:$0xff]
    %v134 = vld [vmem:[%s20 + $0x2a1] sm:$0xff]
    %v135 = vld [vmem:[%s20 + $0x2b1] sm:$0xff]
    %v136 = vperm.slane %v18, 2
    %v137 = vmul.f32 %v120, %v136
    %v138 = vmul.f32 %v121, %v136
    %v139 = vmul.f32 %v122, %v136
    %v140 = vmul.f32 %v123, %v136
    %v141 = vmul.f32 %v124, %v136
    %v142 = vmul.f32 %v125, %v136
    %v143 = vmul.f32 %v126, %v136
    %v144 = vmul.f32 %v127, %v136
    %v145 = vmul.f32 %v128, %v136
    %v146 = vmul.f32 %v129, %v136
    %v147 = vmul.f32 %v130, %v136
    %v148 = vmul.f32 %v131, %v136
    %v149 = vmul.f32 %v132, %v136
    %v150 = vmul.f32 %v133, %v136
    %v151 = vmul.f32 %v134, %v136
    %v152 = vmul.f32 %v135, %v136
    %v153 = vadd.f32 %v104, %v137
    %v154 = vadd.f32 %v105, %v138
    %v155 = vadd.f32 %v106, %v139
    %v156 = vadd.f32 %v107, %v140
    %v157 = vadd.f32 %v108, %v141
    %v158 = vadd.f32 %v109, %v142
    %v159 = vadd.f32 %v110, %v143
    %v160 = vadd.f32 %v111, %v144
    %v161 = vadd.f32 %v112, %v145
    %v162 = vadd.f32 %v113, %v146
    %v163 = vadd.f32 %v114, %v147
    %v164 = vadd.f32 %v115, %v148
    %v165 = vadd.f32 %v116, %v149
    %v166 = vadd.f32 %v117, %v150
    %v167 = vadd.f32 %v118, %v151
    %v168 = vadd.f32 %v119, %v152
    %s169 = scalar_lea.vmem %s0, 160
    %v170 = vld [vmem:[%s169] sm:$0xff]
    %v171 = vld [vmem:[%s169 + $0x10] sm:$0xff]
    %v172 = vld [vmem:[%s169 + $0x20] sm:$0xff]
    %v173 = vld [vmem:[%s169 + $0x30] sm:$0xff]
    %v174 = vld [vmem:[%s169 + $0x40] sm:$0xff]
    %v175 = vld [vmem:[%s169 + $0x50] sm:$0xff]
    %v176 = vld [vmem:[%s169 + $0x60] sm:$0xff]
    %v177 = vld [vmem:[%s169 + $0x70] sm:$0xff]
    %v178 = vld [vmem:[%s169 + $0x240] sm:$0xff]
    %v179 = vld [vmem:[%s169 + $0x250] sm:$0xff]
    %v180 = vld [vmem:[%s169 + $0x260] sm:$0xff]
    %v181 = vld [vmem:[%s169 + $0x270] sm:$0xff]
    %v182 = vld [vmem:[%s169 + $0x280] sm:$0xff]
    %v183 = vld [vmem:[%s169 + $0x290] sm:$0xff]
    %v184 = vld [vmem:[%s169 + $0x2a0] sm:$0xff]
    %v185 = vld [vmem:[%s169 + $0x2b0] sm:$0xff]
    %v186 = vperm.slane %v18, 3
    %v187 = vmul.f32 %v170, %v186
    %v188 = vmul.f32 %v171, %v186
    %v189 = vmul.f32 %v172, %v186
    %v190 = vmul.f32 %v173, %v186
    %v191 = vmul.f32 %v174, %v186
    %v192 = vmul.f32 %v175, %v186
    %v193 = vmul.f32 %v176, %v186
    %v194 = vmul.f32 %v177, %v186
    %v195 = vmul.f32 %v178, %v186
    %v196 = vmul.f32 %v179, %v186
    %v197 = vmul.f32 %v180, %v186
    %v198 = vmul.f32 %v181, %v186
    %v199 = vmul.f32 %v182, %v186
    %v200 = vmul.f32 %v183, %v186
    %v201 = vmul.f32 %v184, %v186
    %v202 = vmul.f32 %v185, %v186
    %v203 = vadd.f32 %v153, %v187
    %v204 = vadd.f32 %v154, %v188
    %v205 = vadd.f32 %v155, %v189
    %v206 = vadd.f32 %v156, %v190
    %v207 = vadd.f32 %v157, %v191
    %v208 = vadd.f32 %v158, %v192
    %v209 = vadd.f32 %v159, %v193
    %v210 = vadd.f32 %v160, %v194
    %v211 = vadd.f32 %v161, %v195
    %v212 = vadd.f32 %v162, %v196
    %v213 = vadd.f32 %v163, %v197
    %v214 = vadd.f32 %v164, %v198
    %v215 = vadd.f32 %v165, %v199
    %v216 = vadd.f32 %v166, %v200
    %v217 = vadd.f32 %v167, %v201
    %v218 = vadd.f32 %v168, %v202
    %s219 = scalar_lea.vmem %s0, 16
    %v220 = vld [vmem:[%s219 + $0x1] sm:$0xff]
    %v221 = vld [vmem:[%s219 + $0x11] sm:$0xff]
    %v222 = vld [vmem:[%s219 + $0x21] sm:$0xff]
    %v223 = vld [vmem:[%s219 + $0x31] sm:$0xff]
    %v224 = vld [vmem:[%s219 + $0x41] sm:$0xff]
    %v225 = vld [vmem:[%s219 + $0x51] sm:$0xff]
    %v226 = vld [vmem:[%s219 + $0x61] sm:$0xff]
    %v227 = vld [vmem:[%s219 + $0x71] sm:$0xff]
    %v228 = vld [vmem:[%s219 + $0x241] sm:$0xff]
    %v229 = vld [vmem:[%s219 + $0x251] sm:$0xff]
    %v230 = vld [vmem:[%s219 + $0x261] sm:$0xff]
    %v231 = vld [vmem:[%s219 + $0x271] sm:$0xff]
    %v232 = vld [vmem:[%s219 + $0x281] sm:$0xff]
    %v233 = vld [vmem:[%s219 + $0x291] sm:$0xff]
    %v234 = vld [vmem:[%s219 + $0x2a1] sm:$0xff]
    %v235 = vld [vmem:[%s219 + $0x2b1] sm:$0xff]
    %v236 = vperm.slane %v18, 4
    %v237 = vmul.f32 %v220, %v236
    %v238 = vmul.f32 %v221, %v236
    %v239 = vmul.f32 %v222, %v236
    %v240 = vmul.f32 %v223, %v236
    %v241 = vmul.f32 %v224, %v236
    %v242 = vmul.f32 %v225, %v236
    %v243 = vmul.f32 %v226, %v236
    %v244 = vmul.f32 %v227, %v236
    %v245 = vmul.f32 %v228, %v236
    %v246 = vmul.f32 %v229, %v236
    %v247 = vmul.f32 %v230, %v236
    %v248 = vmul.f32 %v231, %v236
    %v249 = vmul.f32 %v232, %v236
    %v250 = vmul.f32 %v233, %v236
    %v251 = vmul.f32 %v234, %v236
    %v252 = vmul.f32 %v235, %v236
    %v253 = vadd.f32 %v203, %v237
    %v254 = vadd.f32 %v204, %v238
    %v255 = vadd.f32 %v205, %v239
    %v256 = vadd.f32 %v206, %v240
    %v257 = vadd.f32 %v207, %v241
    %v258 = vadd.f32 %v208, %v242
    %v259 = vadd.f32 %v209, %v243
    %v260 = vadd.f32 %v210, %v244
    %v261 = vadd.f32 %v211, %v245
    %v262 = vadd.f32 %v212, %v246
    %v263 = vadd.f32 %v213, %v247
    %v264 = vadd.f32 %v214, %v248
    %v265 = vadd.f32 %v215, %v249
    %v266 = vadd.f32 %v216, %v250
    %v267 = vadd.f32 %v217, %v251
    %v268 = vadd.f32 %v218, %v252
    %v269 = vld [vmem:[%s169 + $0x1] sm:$0xff]
    %v270 = vld [vmem:[%s169 + $0x11] sm:$0xff]
    %v271 = vld [vmem:[%s169 + $0x21] sm:$0xff]
    %v272 = vld [vmem:[%s169 + $0x31] sm:$0xff]
    %v273 = vld [vmem:[%s169 + $0x41] sm:$0xff]
    %v274 = vld [vmem:[%s169 + $0x51] sm:$0xff]
    %v275 = vld [vmem:[%s169 + $0x61] sm:$0xff]
    %v276 = vld [vmem:[%s169 + $0x71] sm:$0xff]
    %v277 = vld [vmem:[%s169 + $0x241] sm:$0xff]
    %v278 = vld [vmem:[%s169 + $0x251] sm:$0xff]
    %v279 = vld [vmem:[%s169 + $0x261] sm:$0xff]
    %v280 = vld [vmem:[%s169 + $0x271] sm:$0xff]
    %v281 = vld [vmem:[%s169 + $0x281] sm:$0xff]
    %v282 = vld [vmem:[%s169 + $0x291] sm:$0xff]
    %v283 = vld [vmem:[%s169 + $0x2a1] sm:$0xff]
    %v284 = vld [vmem:[%s169 + $0x2b1] sm:$0xff]
    %v285 = vperm.slane %v18, 5
    %v286 = vmul.f32 %v269, %v285
    %v287 = vmul.f32 %v270, %v285
    %v288 = vmul.f32 %v271, %v285
    %v289 = vmul.f32 %v272, %v285
    %v290 = vmul.f32 %v273, %v285
    %v291 = vmul.f32 %v274, %v285
    %v292 = vmul.f32 %v275, %v285
    %v293 = vmul.f32 %v276, %v285
    %v294 = vmul.f32 %v277, %v285
    %v295 = vmul.f32 %v278, %v285
    %v296 = vmul.f32 %v279, %v285
    %v297 = vmul.f32 %v280, %v285
    %v298 = vmul.f32 %v281, %v285
    %v299 = vmul.f32 %v282, %v285
    %v300 = vmul.f32 %v283, %v285
    %v301 = vmul.f32 %v284, %v285
    %v302 = vadd.f32 %v253, %v286
    %v303 = vadd.f32 %v254, %v287
    %v304 = vadd.f32 %v255, %v288
    %v305 = vadd.f32 %v256, %v289
    %v306 = vadd.f32 %v257, %v290
    %v307 = vadd.f32 %v258, %v291
    %v308 = vadd.f32 %v259, %v292
    %v309 = vadd.f32 %v260, %v293
    %v310 = vadd.f32 %v261, %v294
    %v311 = vadd.f32 %v262, %v295
    %v312 = vadd.f32 %v263, %v296
    %v313 = vadd.f32 %v264, %v297
    %v314 = vadd.f32 %v265, %v298
    %v315 = vadd.f32 %v266, %v299
    %v316 = vadd.f32 %v267, %v300
    %v317 = vadd.f32 %v268, %v301
    %s318 = scalar_lea.vmem %s0, 448
    %v319 = vld [vmem:[%s318] sm:$0xff]
    %v320 = vld [vmem:[%s318 + $0x10] sm:$0xff]
    %v321 = vld [vmem:[%s318 + $0x20] sm:$0xff]
    %v322 = vld [vmem:[%s318 + $0x30] sm:$0xff]
    %v323 = vld [vmem:[%s318 + $0x40] sm:$0xff]
    %v324 = vld [vmem:[%s318 + $0x50] sm:$0xff]
    %v325 = vld [vmem:[%s318 + $0x60] sm:$0xff]
    %v326 = vld [vmem:[%s318 + $0x70] sm:$0xff]
    %v327 = vld [vmem:[%s318 + $0x240] sm:$0xff]
    %v328 = vld [vmem:[%s318 + $0x250] sm:$0xff]
    %v329 = vld [vmem:[%s318 + $0x260] sm:$0xff]
    %v330 = vld [vmem:[%s318 + $0x270] sm:$0xff]
    %v331 = vld [vmem:[%s318 + $0x280] sm:$0xff]
    %v332 = vld [vmem:[%s318 + $0x290] sm:$0xff]
    %v333 = vld [vmem:[%s318 + $0x2a0] sm:$0xff]
    %v334 = vld [vmem:[%s318 + $0x2b0] sm:$0xff]
    %v335 = vperm.slane %v18, 6
    %v336 = vmul.f32 %v319, %v335
    %v337 = vmul.f32 %v320, %v335
    %v338 = vmul.f32 %v321, %v335
    %v339 = vmul.f32 %v322, %v335
    %v340 = vmul.f32 %v323, %v335
    %v341 = vmul.f32 %v324, %v335
    %v342 = vmul.f32 %v325, %v335
    %v343 = vmul.f32 %v326, %v335
    %v344 = vmul.f32 %v327, %v335
    %v345 = vmul.f32 %v328, %v335
    %v346 = vmul.f32 %v329, %v335
    %v347 = vmul.f32 %v330, %v335
    %v348 = vmul.f32 %v331, %v335
    %v349 = vmul.f32 %v332, %v335
    %v350 = vmul.f32 %v333, %v335
    %v351 = vmul.f32 %v334, %v335
    %v352 = vadd.f32 %v302, %v336
    %v353 = vadd.f32 %v303, %v337
    %v354 = vadd.f32 %v304, %v338
    %v355 = vadd.f32 %v305, %v339
    %v356 = vadd.f32 %v306, %v340
    %v357 = vadd.f32 %v307, %v341
    %v358 = vadd.f32 %v308, %v342
    %v359 = vadd.f32 %v309, %v343
    %v360 = vadd.f32 %v310, %v344
    %v361 = vadd.f32 %v311, %v345
    %v362 = vadd.f32 %v312, %v346
    %v363 = vadd.f32 %v313, %v347
    %v364 = vadd.f32 %v314, %v348
    %v365 = vadd.f32 %v315, %v349
    %v366 = vadd.f32 %v316, %v350
    %v367 = vadd.f32 %v317, %v351
    %s368 = scalar_lea.vmem %s0, 304
    %v369 = vld [vmem:[%s368 + $0x1] sm:$0xff]
    %v370 = vld [vmem:[%s368 + $0x11] sm:$0xff]
    %v371 = vld [vmem:[%s368 + $0x21] sm:$0xff]
    %v372 = vld [vmem:[%s368 + $0x31] sm:$0xff]
    %v373 = vld [vmem:[%s368 + $0x41] sm:$0xff]
    %v374 = vld [vmem:[%s368 + $0x51] sm:$0xff]
    %v375 = vld [vmem:[%s368 + $0x61] sm:$0xff]
    %v376 = vld [vmem:[%s368 + $0x71] sm:$0xff]
    %v377 = vld [vmem:[%s368 + $0x241] sm:$0xff]
    %v378 = vld [vmem:[%s368 + $0x251] sm:$0xff]
    %v379 = vld [vmem:[%s368 + $0x261] sm:$0xff]
    %v380 = vld [vmem:[%s368 + $0x271] sm:$0xff]
    %v381 = vld [vmem:[%s368 + $0x281] sm:$0xff]
    %v382 = vld [vmem:[%s368 + $0x291] sm:$0xff]
    %v383 = vld [vmem:[%s368 + $0x2a1] sm:$0xff]
    %v384 = vld [vmem:[%s368 + $0x2b1] sm:$0xff]
    %v385 = vperm.slane %v18, 7
    %v386 = vmul.f32 %v369, %v385
    %v387 = vmul.f32 %v370, %v385
    %v388 = vmul.f32 %v371, %v385
    %v389 = vmul.f32 %v372, %v385
    %v390 = vmul.f32 %v373, %v385
    %v391 = vmul.f32 %v374, %v385
    %v392 = vmul.f32 %v375, %v385
    %v393 = vmul.f32 %v376, %v385
    %v394 = vmul.f32 %v377, %v385
    %v395 = vmul.f32 %v378, %v385
    %v396 = vmul.f32 %v379, %v385
    %v397 = vmul.f32 %v380, %v385
    %v398 = vmul.f32 %v381, %v385
    %v399 = vmul.f32 %v382, %v385
    %v400 = vmul.f32 %v383, %v385
    %v401 = vmul.f32 %v384, %v385
    %v402 = vadd.f32 %v352, %v386
    %v403 = vadd.f32 %v353, %v387
    %v404 = vadd.f32 %v354, %v388
    %v405 = vadd.f32 %v355, %v389
    %v406 = vadd.f32 %v356, %v390
    %v407 = vadd.f32 %v357, %v391
    %v408 = vadd.f32 %v358, %v392
    %v409 = vadd.f32 %v359, %v393
    %v410 = vadd.f32 %v360, %v394
    %v411 = vadd.f32 %v361, %v395
    %v412 = vadd.f32 %v362, %v396
    %v413 = vadd.f32 %v363, %v397
    %v414 = vadd.f32 %v364, %v398
    %v415 = vadd.f32 %v365, %v399
    %v416 = vadd.f32 %v366, %v400
    %v417 = vadd.f32 %v367, %v401
    %v418 = vld [vmem:[%s318 + $0x1] sm:$0xff]
    %v419 = vld [vmem:[%s318 + $0x11] sm:$0xff]
    %v420 = vld [vmem:[%s318 + $0x21] sm:$0xff]
    %v421 = vld [vmem:[%s318 + $0x31] sm:$0xff]
    %v422 = vld [vmem:[%s318 + $0x41] sm:$0xff]
    %v423 = vld [vmem:[%s318 + $0x51] sm:$0xff]
    %v424 = vld [vmem:[%s318 + $0x61] sm:$0xff]
    %v425 = vld [vmem:[%s318 + $0x71] sm:$0xff]
    %v426 = vld [vmem:[%s318 + $0x241] sm:$0xff]
    %v427 = vld [vmem:[%s318 + $0x251] sm:$0xff]
    %v428 = vld [vmem:[%s318 + $0x261] sm:$0xff]
    %v429 = vld [vmem:[%s318 + $0x271] sm:$0xff]
    %v430 = vld [vmem:[%s318 + $0x281] sm:$0xff]
    %v431 = vld [vmem:[%s318 + $0x291] sm:$0xff]
    %v432 = vld [vmem:[%s318 + $0x2a1] sm:$0xff]
    %v433 = vld [vmem:[%s318 + $0x2b1] sm:$0xff]
    %v434 = vperm.slane %v19, 0
    %v435 = vmul.f32 %v418, %v434
    %v436 = vmul.f32 %v419, %v434
    %v437 = vmul.f32 %v420, %v434
    %v438 = vmul.f32 %v421, %v434
    %v439 = vmul.f32 %v422, %v434
    %v440 = vmul.f32 %v423, %v434
    %v441 = vmul.f32 %v424, %v434
    %v442 = vmul.f32 %v425, %v434
    %v443 = vmul.f32 %v426, %v434
    %v444 = vmul.f32 %v427, %v434
    %v445 = vmul.f32 %v428, %v434
    %v446 = vmul.f32 %v429, %v434
    %v447 = vmul.f32 %v430, %v434
    %v448 = vmul.f32 %v431, %v434
    %v449 = vmul.f32 %v432, %v434
    %v450 = vmul.f32 %v433, %v434
    %v451 = vadd.f32 %v402, %v435
    %v452 = vadd.f32 %v403, %v436
    %v453 = vadd.f32 %v404, %v437
    %v454 = vadd.f32 %v405, %v438
    %v455 = vadd.f32 %v406, %v439
    %v456 = vadd.f32 %v407, %v440
    %v457 = vadd.f32 %v408, %v441
    %v458 = vadd.f32 %v409, %v442
    %v459 = vadd.f32 %v410, %v443
    %v460 = vadd.f32 %v411, %v444
    %v461 = vadd.f32 %v412, %v445
    %v462 = vadd.f32 %v413, %v446
    %v463 = vadd.f32 %v414, %v447
    %v464 = vadd.f32 %v415, %v448
    %v465 = vadd.f32 %v416, %v449
    %v466 = vadd.f32 %v417, %v450
    %v467 = vld [vmem:[%s2] sm:$0xff]
    %v468 = vld [vmem:[%s3] sm:$0xff]
    %470 = vset.pattern.permute.xlu0 0
    %471 = vperm.xlu0 %470, %v468
    %v472 = vpop.permute.xlu0 %471
    %vm474 = vcmask 31744
    %v476 = vsel %vm474, %v467, 0
    %v479 = vsel %vm474, %v451, 0
    %v482 = vsel %vm474, %v452, 0
    %v485 = vsel %vm474, %v453, 0
    %v488 = vsel %vm474, %v454, 0
    %v491 = vsel %vm474, %v455, 0
    %v494 = vsel %vm474, %v456, 0
    %v497 = vsel %vm474, %v457, 0
    %v500 = vsel %vm474, %v458, 0
    %502 = vmatpush.xpose.msra.mxu0 0.0
    %503 = vmatpush.xpose.msra.mxu0 0.0
    %504 = vmatpush.xpose.msra.mxu0 0.0
    %505 = vmatpush.xpose.msra.mxu0 0.0
    %506 = vmatpush.xpose.msra.mxu0 0.0
    %507 = vmatpush.xpose.msra.mxu0 0.0
    %508 = vmatpush.xpose.msra.mxu0 0.0
    %509 = vmatpush.xpose.msra.mxu0 0.0
    %510 = vmatpush.xpose.msra.mxu0 %v500
    %511 = vmatpush.xpose.msra.mxu0 %v497
    %512 = vmatpush.xpose.msra.mxu0 %v494
    %513 = vmatpush.xpose.msra.mxu0 %v491
    %514 = vmatpush.xpose.msra.mxu0 %v488
    %515 = vmatpush.xpose.msra.mxu0 %v485
    %516 = vmatpush.xpose.msra.mxu0 %v482
    %517 = vmatpush.xpose.msra.mxu0 %v479
    %518 = vmatmul.f32.gmra.mxu0 %v476
    %v519 = vpop.f32.mrf.mxu0
    %v520 = vadd.f32 %v472, %v519
    %521 = vdwg.mxu0
    %v522 = vmax.f32 %v520, 0.0
    %vm523 = vcmask 523264
    %524 = vst.msk [vmem:[#allocation2] sm:$0xff] %vm523, %v522
    %v526 = vsel %vm474, %v459, 0
    %v529 = vsel %vm474, %v460, 0
    %v532 = vsel %vm474, %v461, 0
    %v535 = vsel %vm474, %v462, 0
    %v538 = vsel %vm474, %v463, 0
    %v541 = vsel %vm474, %v464, 0
    %v544 = vsel %vm474, %v465, 0
    %v547 = vsel %vm474, %v466, 0
    %549 = vmatpush.xpose.msra.mxu0 0.0
    %550 = vmatpush.xpose.msra.mxu0 0.0
    %551 = vmatpush.xpose.msra.mxu0 0.0
    %552 = vmatpush.xpose.msra.mxu0 0.0
    %553 = vmatpush.xpose.msra.mxu0 0.0
    %554 = vmatpush.xpose.msra.mxu0 0.0
    %555 = vmatpush.xpose.msra.mxu0 0.0
    %556 = vmatpush.xpose.msra.mxu0 0.0
    %557 = vmatpush.xpose.msra.mxu0 %v547
    %558 = vmatpush.xpose.msra.mxu0 %v544
    %559 = vmatpush.xpose.msra.mxu0 %v541
    %560 = vmatpush.xpose.msra.mxu0 %v538
    %561 = vmatpush.xpose.msra.mxu0 %v535
    %562 = vmatpush.xpose.msra.mxu0 %v532
    %563 = vmatpush.xpose.msra.mxu0 %v529
    %564 = vmatpush.xpose.msra.mxu0 %v526
    %565 = vmatmul.f32.gmra.mxu0 %v476
    %v566 = vpop.f32.mrf.mxu0
    %v567 = vadd.f32 %v472, %v566
    %568 = vdwg.mxu0
    %v569 = vmax.f32 %v567, 0.0
    %s570 = scalar_lea.vmem [#allocation2], 8
    %571 = vst.msk [vmem:[%s570] sm:$0xff] %vm523, %v569
    // Predicated region
    $region18: #{tpu_custom_call.1} parent=1 // pred_check
      _
    $region19: #{tpu_custom_call.1} parent=1 // pred_check_branch
      %573 = sbr.rel (0) target = $region21
    $region20: #{tpu_custom_call.1} parent=1 // pred_region
      %575 = vsyncadd [#allocation3], 0
      %s576 = sshll.u32 [#allocation2], 4
      %s577 = int_to_ptr.vmem [resolvable:$true] %s576
      %s578 = sshll.u32 %s4, 4
      %s579 = int_to_ptr.hbm [resolvable:$true] %s578
      %584 = dma.vmem_to_hbm [thread:$0]  %s577, 256, %s579, [#allocation3], 128, 128, 8
    $region21: #{tpu_custom_call.1} parent=1 // pred_fallthru
      _
    // Predicated region
    $region22: #{tpu_custom_call.1} parent=1 // pred_check
      _
    $region23: #{tpu_custom_call.1} parent=1 // pred_check_branch
      %586 = sbr.rel (0) target = $region25
    $region24: #{tpu_custom_call.1} parent=1 // pred_region
      %588 = dma.done [#allocation3], 256
    $region25: #{tpu_custom_call.1} parent=1 // pred_fallthru
      _
    %589 = vsyncpa [#allocation3], 1

</llo_original>
